<compile_context>
chip_gen: v6e
topology: v6e:2x2x1
jax: 0.10.0
libtpu: 0.0.40
codegen_flags: <defaults>
</compile_context>

<pallas_src>
import jax
import jax.numpy as jnp
from jax.experimental import pallas as pl
from jax.experimental.pallas import tpu as pltpu
from jax.scipy.linalg import block_diag


def _event_gcn_kernel(ev_ref, src_ref, tgt_ref,
                      we_ref, be_ref, w1_ref, b1_ref, w2_ref, b2_ref,
                      out_ref):
    f32 = jnp.float32
    bf16 = jnp.bfloat16
    # event = Linear(event_feature): native bf16 MXU issue, f32 accumulation.
    event = jnp.dot(ev_ref[...].astype(bf16), we_ref[...],
                    preferred_element_type=f32) + be_ref[...]
    # msg = ReLU(tgt + event); h = src + msg  (elementwise math kept in f32).
    msg = jnp.maximum(tgt_ref[...] + event, 0.0)
    h = src_ref[...] + msg
    # MLP: Linear -> ReLU -> Linear.  Downcast matmul inputs to bf16 so the
    # MXU runs at native rate; accumulation stays f32.
    h1 = jnp.maximum(jnp.dot(h.astype(bf16), w1_ref[...],
                             preferred_element_type=f32) + b1_ref[...], 0.0)
    out = jnp.dot(h1.astype(bf16), w2_ref[...],
                  preferred_element_type=f32) + b2_ref[...]
    out_ref[...] = out.astype(out_ref.dtype)          # bf16 store


def _round_up(x, m):
    return (x + m - 1) // m * m


def _pick_fold(node_dim, hid_dim):
    """Smallest row-fold factor making node/hid widths a multiple of the
    128-lane vreg width.  Falls back to 1 (still correct, just masked stores)."""
    for cand in (1, 2, 4, 8, 16):
        if (cand * node_dim) % 128 == 0 and (cand * hid_dim) % 128 == 0:
            return cand
    return 1


def event_gcn_forward(event_feature, src_features, tgt_features, params,
                      *, tile_rows=8192):
    """event_feature: [B, W, L, E]; src/tgt: [B, W, L, N] -> [B, W, L, H] (bf16)."""
    we, be, w1, b1, w2, b2 = params
    B, Wn, L, E = event_feature.shape
    N = src_features.shape[-1]
    H = w1.shape[-1]
    M = B * Wn * L

    fold = _pick_fold(N, H)
    Ef, Nf, Hf = fold * E, fold * N, fold * H

    # Block-diagonal weight copies act on the folded layout exactly like the
    # original per-row linears.  bf16 so the MXU runs at native rate; biases
    # stay f32 (added after the f32 accumulator).  Tiny and grid-invariant,
    # so they are DMA'd once (constant index_map) and kept resident.
    we_f = block_diag(*([jnp.asarray(we, jnp.float32)] * fold)).astype(jnp.bfloat16)
    w1_f = block_diag(*([jnp.asarray(w1, jnp.float32)] * fold)).astype(jnp.bfloat16)
    w2_f = block_diag(*([jnp.asarray(w2, jnp.float32)] * fold)).astype(jnp.bfloat16)
    be_f = jnp.tile(jnp.asarray(be, jnp.float32), fold).reshape(1, Nf)
    b1_f = jnp.tile(jnp.asarray(b1, jnp.float32), fold).reshape(1, Hf)
    b2_f = jnp.tile(jnp.asarray(b2, jnp.float32), fold).reshape(1, Hf)

    # Folded-row geometry.  Rows only padded up to a multiple of 8*fold
    # (sublane alignment of the folded view; usually a no-op).  The grid uses
    # cdiv + Pallas' ragged last block, so no padding to a tile multiple and
    # no wrapper-side dtype-cast HBM round trip.
    Mf_pad = _round_up(pl.cdiv(M, fold), 8)
    M_pad = Mf_pad * fold

    tile_f = max(8, tile_rows // fold)
    # Keep >= 2 grid steps when the problem allows it so the "parallel" axis
    # actually splits across v7x's two TensorCores.
    tile_f = min(tile_f, _round_up(pl.cdiv(Mf_pad, 2), 8))
    grid = (pl.cdiv(Mf_pad, tile_f),)

    def fold_rows(x, feat):
        x2 = x.reshape(M, feat)
        if M_pad != M:
            x2 = jnp.pad(x2, ((0, M_pad - M), (0, 0)))
        return x2.reshape(Mf_pad, fold * feat)        # lane-dense folded view

    ev_f = fold_rows(event_feature.astype(jnp.float32), E)
    src_f = fold_rows(src_features.astype(jnp.float32), N)
    tgt_f = fold_rows(tgt_features.astype(jnp.float32), N)

    flops = 2 * M * (E * N + N * H + H * H)
    bytes_accessed = (M * (E + 2 * N) * 4            # f32 activations in
                      + M * H * 2                    # bf16 output
                      + (Ef * Nf + Nf * Hf + Hf * Hf) * 2   # bf16 weights
                      + (Nf + 2 * Hf) * 4)           # f32 biases

    out_f = pl.pallas_call(
        _event_gcn_kernel,
        out_shape=jax.ShapeDtypeStruct((Mf_pad, Hf), jnp.bfloat16),
        grid_spec=pltpu.PrefetchScalarGridSpec(
            num_scalar_prefetch=0,
            grid=grid,
            in_specs=[
                pl.BlockSpec((tile_f, Ef), lambda i: (i, 0)),   # event (f32, folded)
                pl.BlockSpec((tile_f, Nf), lambda i: (i, 0)),   # src   (f32, folded)
                pl.BlockSpec((tile_f, Nf), lambda i: (i, 0)),   # tgt   (f32, folded)
                pl.BlockSpec((Ef, Nf), lambda i: (0, 0)),       # W_event (bf16 block-diag)
                pl.BlockSpec((1, Nf), lambda i: (0, 0)),        # b_event (f32, tiled)
                pl.BlockSpec((Nf, Hf), lambda i: (0, 0)),       # W1 (bf16 block-diag)
                pl.BlockSpec((1, Hf), lambda i: (0, 0)),        # b1 (f32, tiled)
                pl.BlockSpec((Hf, Hf), lambda i: (0, 0)),       # W2 (bf16 block-diag)
                pl.BlockSpec((1, Hf), lambda i: (0, 0)),        # b2 (f32, tiled)
            ],
            out_specs=pl.BlockSpec((tile_f, Hf), lambda i: (i, 0)),
        ),
        compiler_params=pltpu.CompilerParams(
            dimension_semantics=("parallel",)),
        cost_estimate=pl.CostEstimate(
            flops=flops, transcendentals=0, bytes_accessed=bytes_accessed),
    )(ev_f, src_f, tgt_f, we_f, be_f, w1_f, b1_f, w2_f, b2_f)

    out = out_f.reshape(M_pad, H)[:M]
    return out.reshape(B, Wn, L, H)    # bf16; upcast downstream only if needed


def init_params(key, event_dim, node_dim, hid_dim):
    """Deterministic init mimicking nn.Linear's uniform(-1/sqrt(fan_in), ...).
    Weights stored transposed as [in, out]."""
    ks = jax.random.split(key, 6)

    def lin(kw, kb, fan_in, fan_out):
        bound = 1.0 / jnp.sqrt(jnp.float32(fan_in))
        w = jax.random.uniform(kw, (fan_in, fan_out), jnp.float32, -bound, bound)
        b = jax.random.uniform(kb, (fan_out,), jnp.float32, -bound, bound)
        return w, b

    we, be = lin(ks[0], ks[1], event_dim, node_dim)
    w1, b1 = lin(ks[2], ks[3], node_dim, hid_dim)
    w2, b2 = lin(ks[4], ks[5], hid_dim, hid_dim)
    return we, be, w1, b1, w2, b2


def _reference(event_feature, src_features, tgt_features, params):
    """Pure-JAX reference that mirrors the kernel's quantization points
    (bf16 at every MXU input, f32 accumulation / elementwise math)."""
    we, be, w1, b1, w2, b2 = params
    q = lambda x: x.astype(jnp.bfloat16).astype(jnp.float32)
    event = q(event_feature) @ q(we) + be
    msg = jax.nn.relu(tgt_features + event)
    h = src_features + msg
    h1 = jax.nn.relu(q(h) @ q(w1) + b1)
    return q(h1) @ q(w2) + b2


if __name__ == "__main__":
    event_dim, node_dim, hid_dim = 16, 32, 32
    key = jax.random.PRNGKey(0)
    k_data, k_par = jax.random.split(key)
    params = init_params(k_par, event_dim, node_dim, hid_dim)

    fwd = jax.jit(event_gcn_forward)

    # Two cases: one fold-aligned (exercises grid>=2), one needing tail padding.
    cases = [(2, 8, 16), (2, 3, 4)]       # (bsz, n_walks, length)
    for idx, (B, Wn, L) in enumerate(cases):
        k_ev, k_src, k_tgt = jax.random.split(jax.random.fold_in(k_data, idx), 3)
        event_feature = jax.random.normal(k_ev, (B, Wn, L, event_dim), jnp.float32)
        src_features = jax.random.normal(k_src, (B, Wn, L, node_dim), jnp.float32)
        tgt_features = jax.random.normal(k_tgt, (B, Wn, L, node_dim), jnp.float32)

        out = fwd(event_feature, src_features, tgt_features, params)
        out = jax.block_until_ready(out)

        ref = _reference(event_feature, src_features, tgt_features, params)
        assert out.shape == (B, Wn, L, hid_dim)
        assert jnp.allclose(out.astype(jnp.float32), ref, atol=2e-2, rtol=2e-2), \
            float(jnp.max(jnp.abs(out.astype(jnp.float32) - ref)))

    print("KERNEL_OK")
</pallas_src>

<mosaic_0001>
module attributes {stable_mosaic.version = 11 : i64} {
  func.func @_event_gcn_kernel(%arg0: i32, %arg1: memref<32x64xf32, #tpu.memory_space<vmem>>, %arg2: memref<32x128xf32, #tpu.memory_space<vmem>>, %arg3: memref<32x128xf32, #tpu.memory_space<vmem>>, %arg4: memref<64x128xbf16, #tpu.memory_space<vmem>>, %arg5: memref<1x128xf32, #tpu.memory_space<vmem>>, %arg6: memref<128x128xbf16, #tpu.memory_space<vmem>>, %arg7: memref<1x128xf32, #tpu.memory_space<vmem>>, %arg8: memref<128x128xbf16, #tpu.memory_space<vmem>>, %arg9: memref<1x128xf32, #tpu.memory_space<vmem>>, %arg10: memref<32x128xbf16, #tpu.memory_space<vmem>>) attributes {dimension_semantics = [#tpu.dimension_semantics<parallel>], iteration_bounds = array<i64: 2>, scalar_prefetch = 0 : i64, scratch_operands = 0 : i64, tpu.core_type = #tpu.core_type<tc>, window_params = [{transform_indices = @transform_0, window_bounds = array<i64: 32, 64>}, {transform_indices = @transform_1, window_bounds = array<i64: 32, 128>}, {transform_indices = @transform_2, window_bounds = array<i64: 32, 128>}, {pipeline_mode = #tpu.pipeline_mode<synchronous>, transform_indices = @transform_3, window_bounds = array<i64: 64, 128>}, {pipeline_mode = #tpu.pipeline_mode<synchronous>, transform_indices = @transform_4, window_bounds = array<i64: 1, 128>}, {pipeline_mode = #tpu.pipeline_mode<synchronous>, transform_indices = @transform_5, window_bounds = array<i64: 128, 128>}, {pipeline_mode = #tpu.pipeline_mode<synchronous>, transform_indices = @transform_6, window_bounds = array<i64: 1, 128>}, {pipeline_mode = #tpu.pipeline_mode<synchronous>, transform_indices = @transform_7, window_bounds = array<i64: 128, 128>}, {pipeline_mode = #tpu.pipeline_mode<synchronous>, transform_indices = @transform_8, window_bounds = array<i64: 1, 128>}, {transform_indices = @transform_9, window_bounds = array<i64: 32, 128>}]} {
    %c0 = arith.constant 0 : index
    %c0_0 = arith.constant 0 : index
    %0 = vector.load %arg1[%c0, %c0_0] : memref<32x64xf32, #tpu.memory_space<vmem>>, vector<32x64xf32>
    %1 = arith.truncf %0 : vector<32x64xf32> to vector<32x64xbf16>
    %c0_1 = arith.constant 0 : index
    %c0_2 = arith.constant 0 : index
    %2 = vector.load %arg4[%c0_1, %c0_2] : memref<64x128xbf16, #tpu.memory_space<vmem>>, vector<64x128xbf16>
    %cst = arith.constant dense<0.000000e+00> : vector<32x128xf32>
    %3 = tpu.matmul %1, %2, %cst {dimension_numbers = #tpu.dot_dimension_numbers<[1], [0], [0], [1], [0, 0, 1, 1], [], []>} : vector<32x64xbf16>, vector<64x128xbf16>, vector<32x128xf32> -> vector<32x128xf32>
    %c0_3 = arith.constant 0 : index
    %c0_4 = arith.constant 0 : index
    %4 = vector.load %arg5[%c0_3, %c0_4] : memref<1x128xf32, #tpu.memory_space<vmem>>, vector<1x128xf32>
    %5 = vector.broadcast %4 : vector<1x128xf32> to vector<32x128xf32>
    %6 = arith.addf %3, %5 : vector<32x128xf32>
    %c0_5 = arith.constant 0 : index
    %c0_6 = arith.constant 0 : index
    %7 = vector.load %arg3[%c0_5, %c0_6] : memref<32x128xf32, #tpu.memory_space<vmem>>, vector<32x128xf32>
    %8 = arith.addf %7, %6 : vector<32x128xf32>
    %cst_7 = arith.constant 0.000000e+00 : f32
    %9 = vector.broadcast %cst_7 : f32 to vector<32x128xf32>
    %10 = arith.maximumf %8, %9 : vector<32x128xf32>
    %c0_8 = arith.constant 0 : index
    %c0_9 = arith.constant 0 : index
    %11 = vector.load %arg2[%c0_8, %c0_9] : memref<32x128xf32, #tpu.memory_space<vmem>>, vector<32x128xf32>
    %12 = arith.addf %11, %10 : vector<32x128xf32>
    %13 = arith.truncf %12 : vector<32x128xf32> to vector<32x128xbf16>
    %c0_10 = arith.constant 0 : index
    %c0_11 = arith.constant 0 : index
    %14 = vector.load %arg6[%c0_10, %c0_11] : memref<128x128xbf16, #tpu.memory_space<vmem>>, vector<128x128xbf16>
    %cst_12 = arith.constant dense<0.000000e+00> : vector<32x128xf32>
    %15 = tpu.matmul %13, %14, %cst_12 {dimension_numbers = #tpu.dot_dimension_numbers<[1], [0], [0], [1], [0, 0, 1, 1], [], []>} : vector<32x128xbf16>, vector<128x128xbf16>, vector<32x128xf32> -> vector<32x128xf32>
    %c0_13 = arith.constant 0 : index
    %c0_14 = arith.constant 0 : index
    %16 = vector.load %arg7[%c0_13, %c0_14] : memref<1x128xf32, #tpu.memory_space<vmem>>, vector<1x128xf32>
    %17 = vector.broadcast %16 : vector<1x128xf32> to vector<32x128xf32>
    %18 = arith.addf %15, %17 : vector<32x128xf32>
    %cst_15 = arith.constant 0.000000e+00 : f32
    %19 = vector.broadcast %cst_15 : f32 to vector<32x128xf32>
    %20 = arith.maximumf %18, %19 : vector<32x128xf32>
    %21 = arith.truncf %20 : vector<32x128xf32> to vector<32x128xbf16>
    %c0_16 = arith.constant 0 : index
    %c0_17 = arith.constant 0 : index
    %22 = vector.load %arg8[%c0_16, %c0_17] : memref<128x128xbf16, #tpu.memory_space<vmem>>, vector<128x128xbf16>
    %cst_18 = arith.constant dense<0.000000e+00> : vector<32x128xf32>
    %23 = tpu.matmul %21, %22, %cst_18 {dimension_numbers = #tpu.dot_dimension_numbers<[1], [0], [0], [1], [0, 0, 1, 1], [], []>} : vector<32x128xbf16>, vector<128x128xbf16>, vector<32x128xf32> -> vector<32x128xf32>
    %c0_19 = arith.constant 0 : index
    %c0_20 = arith.constant 0 : index
    %24 = vector.load %arg9[%c0_19, %c0_20] : memref<1x128xf32, #tpu.memory_space<vmem>>, vector<1x128xf32>
    %25 = vector.broadcast %24 : vector<1x128xf32> to vector<32x128xf32>
    %26 = arith.addf %23, %25 : vector<32x128xf32>
    %27 = arith.truncf %26 : vector<32x128xf32> to vector<32x128xbf16>
    %c0_21 = arith.constant 0 : index
    %c0_22 = arith.constant 0 : index
    %28 = vector.load %arg10[%c0_21, %c0_22] : memref<32x128xbf16, #tpu.memory_space<vmem>>, vector<32x128xbf16>
    tpu.vector_store %arg10[%c0_21, %c0_22], %27 {strides = array<i32>} : memref<32x128xbf16, #tpu.memory_space<vmem>>, vector<32x128xbf16>,
    return
  }
  func.func @transform_0(%arg0: i32) -> (i32, i32) {
    %c0_i32 = arith.constant 0 : i32
    %c0_i32_0 = arith.constant 0 : i32
    return %arg0, %c0_i32 : i32, i32
  }
  func.func @transform_1(%arg0: i32) -> (i32, i32) {
    %c0_i32 = arith.constant 0 : i32
    %c0_i32_0 = arith.constant 0 : i32
    return %arg0, %c0_i32 : i32, i32
  }
  func.func @transform_2(%arg0: i32) -> (i32, i32) {
    %c0_i32 = arith.constant 0 : i32
    %c0_i32_0 = arith.constant 0 : i32
    return %arg0, %c0_i32 : i32, i32
  }
  func.func @transform_3(%arg0: i32) -> (i32, i32) {
    %c0_i32 = arith.constant 0 : i32
    %c0_i32_0 = arith.constant 0 : i32
    %c0_i32_1 = arith.constant 0 : i32
    return %c0_i32, %c0_i32_0 : i32, i32
  }
  func.func @transform_4(%arg0: i32) -> (i32, i32) {
    %c0_i32 = arith.constant 0 : i32
    %c0_i32_0 = arith.constant 0 : i32
    %c0_i32_1 = arith.constant 0 : i32
    return %c0_i32, %c0_i32_0 : i32, i32
  }
  func.func @transform_5(%arg0: i32) -> (i32, i32) {
    %c0_i32 = arith.constant 0 : i32
    %c0_i32_0 = arith.constant 0 : i32
    %c0_i32_1 = arith.constant 0 : i32
    return %c0_i32, %c0_i32_0 : i32, i32
  }
  func.func @transform_6(%arg0: i32) -> (i32, i32) {
    %c0_i32 = arith.constant 0 : i32
    %c0_i32_0 = arith.constant 0 : i32
    %c0_i32_1 = arith.constant 0 : i32
    return %c0_i32, %c0_i32_0 : i32, i32
  }
  func.func @transform_7(%arg0: i32) -> (i32, i32) {
    %c0_i32 = arith.constant 0 : i32
    %c0_i32_0 = arith.constant 0 : i32
    %c0_i32_1 = arith.constant 0 : i32
    return %c0_i32, %c0_i32_0 : i32, i32
  }
  func.func @transform_8(%arg0: i32) -> (i32, i32) {
    %c0_i32 = arith.constant 0 : i32
    %c0_i32_0 = arith.constant 0 : i32
    %c0_i32_1 = arith.constant 0 : i32
    return %c0_i32, %c0_i32_0 : i32, i32
  }
  func.func @transform_9(%arg0: i32) -> (i32, i32) {
    %c0_i32 = arith.constant 0 : i32
    %c0_i32_0 = arith.constant 0 : i32
    return %arg0, %c0_i32 : i32, i32
  }
}

</mosaic_0001>

<llo_original>
// kernel: tile.18
$region0: #{tile.18}
  #allocation0 [shape = 's32[1]{0}', space=sflag, size = 0x4, scoped, tag = 'scoped memory for tile.18']
  %s0 = inlined_call_operand.vmem [shape: f32[32], index: 0, kind: input, shape index: {}]
  %s1 = inlined_call_operand.vmem [shape: f32[4,32], index: 1, kind: output, shape index: {}]
  // Predicated region
  $region2: #{tile.18} parent=0 // pred_check
    _
  $region3: #{tile.18} parent=0 // pred_check_branch
    %3 = sbr.rel (0) target = $region5
  $region4: #{tile.18} parent=0 // pred_region
    _
  $region5: #{tile.18} parent=0 // pred_fallthru
    _
  %v4 = vld [vmem:[%s0] ss:$0 sm:$0xff]
  %5 = vst [vmem:[%s1] sm:$0xf] %v4

// kernel: tile.19
$region0: #{tile.19}
  %s0 = inlined_call_operand.vmem [shape: f32[4,32], index: 0, kind: input, shape index: {}]
  %s1 = inlined_call_operand.vmem [shape: f32[1,128], index: 1, kind: output, shape index: {}]
  $region1: #{tile.19} parent=0
    #allocation0 [shape = 'u8[4096]{0}', space=vmem, size = 0x1000, scoped, tag = 'scoped mem for output reshape']
    #allocation1 [shape = 'u8[4096]{0}', space=vmem, size = 0x1000, scoped, tag = 'scoped mem for input reshape']
    %s3 = sshll.u32 1, 4
    %s4 = ssub.s32 %s3, 1
    %v5 = vld [vmem:[%s0] sm:%s4]
    %6 = vst [vmem:[#allocation1] sm:%s4] %v5
    %v7 = vld [vmem:[#allocation1] sm:$0x1]
    %vm8 = vcmask 261120
    %9 = vst.msk [vmem:[#allocation0] sm:$0x1] %vm8, %v7
    %s10 = scalar_lea.vmem [#allocation1], 3
    %v11 = vld [vmem:[%s10] sm:$0x1]
    %12 = vrot.lane.b32.xlu0 %v11, 96
    %v13 = vpop.permute.xlu0 %12
    %vm14 = vcmask 1048320
    %15 = vst.msk [vmem:[#allocation0] sm:$0x1] %vm14, %v13
    %s16 = scalar_lea.vmem [#allocation1], 2
    %v17 = vld [vmem:[%s16] sm:$0x1]
    %18 = vrot.lane.b32.xlu0 %v17, 64
    %v19 = vpop.permute.xlu0 %18
    %vm20 = vcmask 785920
    %21 = vst.msk [vmem:[#allocation0] sm:$0x1] %vm20, %v19
    %s22 = scalar_lea.vmem [#allocation1], 1
    %v23 = vld [vmem:[%s22] sm:$0x1]
    %24 = vrot.lane.b32.xlu0 %v23, 32
    %v25 = vpop.permute.xlu0 %24
    %vm26 = vcmask 523520
    %27 = vst.msk [vmem:[#allocation0] sm:$0x1] %vm26, %v25
    %s29 = sshll.u32 1, 1
    %s30 = ssub.s32 %s29, 1
    %v32 = vld [vmem:[#allocation0] sm:%s30]
    %s33 = sshll.u32 1, 1
    %s34 = ssub.s32 %s33, 1
    %35 = vst [vmem:[%s1] sm:%s34] %v32

// kernel: event_gcn_forward.1
$region0: #{event_gcn_forward.1}
  #allocation0 [shape = 'u32[]', space=smem, size = 0x4, offset = 0x4, fixed_abs, tag = 'smem constant byte address 0x4 - core index']
  #allocation1 [shape = 'u32[144,128]{1,0:T(1,128)}', space=vmem, size = 0x12000, scoped, tag = 'internal scratch']
  %s0 = inlined_call_operand.vmem [shape: f32[64,64], index: 0, kind: input, shape index: {}]
  %s1 = inlined_call_operand.vmem [shape: f32[64,128], index: 1, kind: input, shape index: {}]
  %s2 = inlined_call_operand.vmem [shape: f32[64,128], index: 2, kind: input, shape index: {}]
  %s3 = inlined_call_operand.vmem [shape: bf16[64,128], index: 3, kind: input, shape index: {}]
  %s4 = inlined_call_operand.vmem [shape: f32[1,128], index: 4, kind: input, shape index: {}]
  %s5 = inlined_call_operand.vmem [shape: bf16[128,128], index: 5, kind: input, shape index: {}]
  %s6 = inlined_call_operand.vmem [shape: f32[1,128], index: 6, kind: input, shape index: {}]
  %s7 = inlined_call_operand.vmem [shape: bf16[128,128], index: 7, kind: input, shape index: {}]
  %s8 = inlined_call_operand.vmem [shape: f32[1,128], index: 8, kind: input, shape index: {}]
  %s9 = inlined_call_operand.vmem [shape: bf16[64,128], index: 9, kind: output, shape index: {}]
  %s10 = sld [smem:[#allocation0]]
  $region69: #{event_gcn_forward.1} parent=0
    _
  %s12 = ssub.s32 1, %s10
  %s13 = scalar_select 0, %s12, %s10
  loop: start=0, step=1, limit=4
  $region2: #{event_gcn_forward.1} parent=0 // loop_pre_header
    _
  $region3: #{event_gcn_forward.1} parent=0 // loop_header
    %s15 = sphi 0, %s19
    %p16 = scmp.ge.s32.totalorder %s15, 4
    %s25 = sphi 0, %s27
    %s28 = sphi 0, %s25
    %s29 = sphi 0, %s28
    %s45 = sphi 0, %s29
    %s51 = sphi 0, %s53
    %s54 = sphi 0, %s51
    %s55 = sphi 0, %s54
    %s71 = sphi 0, %s55
    %s77 = sphi 0, %s79
    %s80 = sphi 0, %s77
    %s81 = sphi 0, %s80
    %s97 = sphi 0, %s81
    %s101 = sphi 0, %s101
    %s103 = sphi 0, %s101
    %s104 = sphi 0, %s103
    %s118 = sphi 0, %s104
    %s122 = sphi 0, %s122
    %s124 = sphi 0, %s122
    %s125 = sphi 0, %s124
    %s139 = sphi 0, %s125
    %s143 = sphi 0, %s143
    %s145 = sphi 0, %s143
    %s146 = sphi 0, %s145
    %s160 = sphi 0, %s146
    %s164 = sphi 0, %s164
    %s166 = sphi 0, %s164
    %s167 = sphi 0, %s166
    %s181 = sphi 0, %s167
    %s185 = sphi 0, %s185
    %s187 = sphi 0, %s185
    %s188 = sphi 0, %s187
    %s202 = sphi 0, %s188
    %s206 = sphi 0, %s206
    %s208 = sphi 0, %s206
    %s209 = sphi 0, %s208
    %s223 = sphi 0, %s209
    %s229 = sphi 0, %s231
    %s232 = sphi 0, %s229
    %s233 = sphi 0, %s232
    %s249 = sphi 0, %s233
  $region4: #{event_gcn_forward.1} parent=0 // loop_header_branch
    %18 = sbr.rel (%p16) target = $region8
  $region5: #{event_gcn_forward.1} parent=0 // loop_body
    %s20 = ssub.s32 %s15, 1
    %s21 = ssub.s32 %s15, 2
    %s22 = sadd.s32 %s15, 1
    %s23 = ssub.s32 %s15, %s22
    %p24 = scmp.eq.s32.totalorder %s23, 0
    %s26 = sadd.s32 %s25, 1
    %s27 = scalar_select %p24, %s25, %s26
    %p30 = pneg %p24
    %p31 = scmp.eq.s32.totalorder %s15, 1
    %p32 = por %p30, %p31
    %p33 = scmp.ne.s32.totalorder %s25, %s28
    %p34 = scmp.eq.s32.totalorder %s15, 0
    %p35 = por %p33, %p34
    %p36 = scmp.ne.s32.totalorder %s25, %s28
    %p37 = scmp.eq.s32.totalorder %s20, 1
    %p38 = por %p36, %p37
    %p39 = scmp.ne.s32.totalorder %s28, %s29
    %p40 = scmp.eq.s32.totalorder %s20, 0
    %p41 = por %p39, %p40
    %p42 = scmp.ne.s32.totalorder %s28, %s29
    %p43 = scmp.eq.s32.totalorder %s21, 1
    %p44 = por %p42, %p43
    %p46 = scmp.ne.s32.totalorder %s29, %s45
    %p47 = scmp.eq.s32.totalorder %s21, 0
    %p48 = por %p46, %p47
    %s49 = ssub.s32 %s15, %s22
    %p50 = scmp.eq.s32.totalorder %s49, 0
    %s52 = sadd.s32 %s51, 1
    %s53 = scalar_select %p50, %s51, %s52
    %p56 = pneg %p50
    %p57 = scmp.eq.s32.totalorder %s15, 1
    %p58 = por %p56, %p57
    %p59 = scmp.ne.s32.totalorder %s51, %s54
    %p60 = scmp.eq.s32.totalorder %s15, 0
    %p61 = por %p59, %p60
    %p62 = scmp.ne.s32.totalorder %s51, %s54
    %p63 = scmp.eq.s32.totalorder %s20, 1
    %p64 = por %p62, %p63
    %p65 = scmp.ne.s32.totalorder %s54, %s55
    %p66 = scmp.eq.s32.totalorder %s20, 0
    %p67 = por %p65, %p66
    %p68 = scmp.ne.s32.totalorder %s54, %s55
    %p69 = scmp.eq.s32.totalorder %s21, 1
    %p70 = por %p68, %p69
    %p72 = scmp.ne.s32.totalorder %s55, %s71
    %p73 = scmp.eq.s32.totalorder %s21, 0
    %p74 = por %p72, %p73
    %s75 = ssub.s32 %s15, %s22
    %p76 = scmp.eq.s32.totalorder %s75, 0
    %s78 = sadd.s32 %s77, 1
    %s79 = scalar_select %p76, %s77, %s78
    %p82 = pneg %p76
    %p83 = scmp.eq.s32.totalorder %s15, 1
    %p84 = por %p82, %p83
    %p85 = scmp.ne.s32.totalorder %s77, %s80
    %p86 = scmp.eq.s32.totalorder %s15, 0
    %p87 = por %p85, %p86
    %p88 = scmp.ne.s32.totalorder %s77, %s80
    %p89 = scmp.eq.s32.totalorder %s20, 1
    %p90 = por %p88, %p89
    %p91 = scmp.ne.s32.totalorder %s80, %s81
    %p92 = scmp.eq.s32.totalorder %s20, 0
    %p93 = por %p91, %p92
    %p94 = scmp.ne.s32.totalorder %s80, %s81
    %p95 = scmp.eq.s32.totalorder %s21, 1
    %p96 = por %p94, %p95
    %p98 = scmp.ne.s32.totalorder %s81, %s97
    %p99 = scmp.eq.s32.totalorder %s21, 0
    %p100 = por %p98, %p99
    %s102 = sadd.s32 %s101, 1
    %p105 = scmp.eq.s32.totalorder %s15, 1
    %p106 = scmp.ne.s32.totalorder %s101, %s103
    %p107 = scmp.eq.s32.totalorder %s15, 0
    %p108 = por %p106, %p107
    %p109 = scmp.ne.s32.totalorder %s101, %s103
    %p110 = scmp.eq.s32.totalorder %s20, 1
    %p111 = por %p109, %p110
    %p112 = scmp.ne.s32.totalorder %s103, %s104
    %p113 = scmp.eq.s32.totalorder %s20, 0
    %p114 = por %p112, %p113
    %p115 = scmp.ne.s32.totalorder %s103, %s104
    %p116 = scmp.eq.s32.totalorder %s21, 1
    %p117 = por %p115, %p116
    %p119 = scmp.ne.s32.totalorder %s104, %s118
    %p120 = scmp.eq.s32.totalorder %s21, 0
    %p121 = por %p119, %p120
    %s123 = sadd.s32 %s122, 1
    %p126 = scmp.eq.s32.totalorder %s15, 1
    %p127 = scmp.ne.s32.totalorder %s122, %s124
    %p128 = scmp.eq.s32.totalorder %s15, 0
    %p129 = por %p127, %p128
    %p130 = scmp.ne.s32.totalorder %s122, %s124
    %p131 = scmp.eq.s32.totalorder %s20, 1
    %p132 = por %p130, %p131
    %p133 = scmp.ne.s32.totalorder %s124, %s125
    %p134 = scmp.eq.s32.totalorder %s20, 0
    %p135 = por %p133, %p134
    %p136 = scmp.ne.s32.totalorder %s124, %s125
    %p137 = scmp.eq.s32.totalorder %s21, 1
    %p138 = por %p136, %p137
    %p140 = scmp.ne.s32.totalorder %s125, %s139
    %p141 = scmp.eq.s32.totalorder %s21, 0
    %p142 = por %p140, %p141
    %s144 = sadd.s32 %s143, 1
    %p147 = scmp.eq.s32.totalorder %s15, 1
    %p148 = scmp.ne.s32.totalorder %s143, %s145
    %p149 = scmp.eq.s32.totalorder %s15, 0
    %p150 = por %p148, %p149
    %p151 = scmp.ne.s32.totalorder %s143, %s145
    %p152 = scmp.eq.s32.totalorder %s20, 1
    %p153 = por %p151, %p152
    %p154 = scmp.ne.s32.totalorder %s145, %s146
    %p155 = scmp.eq.s32.totalorder %s20, 0
    %p156 = por %p154, %p155
    %p157 = scmp.ne.s32.totalorder %s145, %s146
    %p158 = scmp.eq.s32.totalorder %s21, 1
    %p159 = por %p157, %p158
    %p161 = scmp.ne.s32.totalorder %s146, %s160
    %p162 = scmp.eq.s32.totalorder %s21, 0
    %p163 = por %p161, %p162
    %s165 = sadd.s32 %s164, 1
    %p168 = scmp.eq.s32.totalorder %s15, 1
    %p169 = scmp.ne.s32.totalorder %s164, %s166
    %p170 = scmp.eq.s32.totalorder %s15, 0
    %p171 = por %p169, %p170
    %p172 = scmp.ne.s32.totalorder %s164, %s166
    %p173 = scmp.eq.s32.totalorder %s20, 1
    %p174 = por %p172, %p173
    %p175 = scmp.ne.s32.totalorder %s166, %s167
    %p176 = scmp.eq.s32.totalorder %s20, 0
    %p177 = por %p175, %p176
    %p178 = scmp.ne.s32.totalorder %s166, %s167
    %p179 = scmp.eq.s32.totalorder %s21, 1
    %p180 = por %p178, %p179
    %p182 = scmp.ne.s32.totalorder %s167, %s181
    %p183 = scmp.eq.s32.totalorder %s21, 0
    %p184 = por %p182, %p183
    %s186 = sadd.s32 %s185, 1
    %p189 = scmp.eq.s32.totalorder %s15, 1
    %p190 = scmp.ne.s32.totalorder %s185, %s187
    %p191 = scmp.eq.s32.totalorder %s15, 0
    %p192 = por %p190, %p191
    %p193 = scmp.ne.s32.totalorder %s185, %s187
    %p194 = scmp.eq.s32.totalorder %s20, 1
    %p195 = por %p193, %p194
    %p196 = scmp.ne.s32.totalorder %s187, %s188
    %p197 = scmp.eq.s32.totalorder %s20, 0
    %p198 = por %p196, %p197
    %p199 = scmp.ne.s32.totalorder %s187, %s188
    %p200 = scmp.eq.s32.totalorder %s21, 1
    %p201 = por %p199, %p200
    %p203 = scmp.ne.s32.totalorder %s188, %s202
    %p204 = scmp.eq.s32.totalorder %s21, 0
    %p205 = por %p203, %p204
    %s207 = sadd.s32 %s206, 1
    %p210 = scmp.eq.s32.totalorder %s15, 1
    %p211 = scmp.ne.s32.totalorder %s206, %s208
    %p212 = scmp.eq.s32.totalorder %s15, 0
    %p213 = por %p211, %p212
    %p214 = scmp.ne.s32.totalorder %s206, %s208
    %p215 = scmp.eq.s32.totalorder %s20, 1
    %p216 = por %p214, %p215
    %p217 = scmp.ne.s32.totalorder %s208, %s209
    %p218 = scmp.eq.s32.totalorder %s20, 0
    %p219 = por %p217, %p218
    %p220 = scmp.ne.s32.totalorder %s208, %s209
    %p221 = scmp.eq.s32.totalorder %s21, 1
    %p222 = por %p220, %p221
    %p224 = scmp.ne.s32.totalorder %s209, %s223
    %p225 = scmp.eq.s32.totalorder %s21, 0
    %p226 = por %p224, %p225
    %s227 = ssub.s32 %s15, %s22
    %p228 = scmp.eq.s32.totalorder %s227, 0
    %s230 = sadd.s32 %s229, 1
    %s231 = scalar_select %p228, %s229, %s230
    %p234 = pneg %p228
    %p235 = scmp.eq.s32.totalorder %s15, 1
    %p236 = por %p234, %p235
    %p237 = scmp.ne.s32.totalorder %s229, %s232
    %p238 = scmp.eq.s32.totalorder %s15, 0
    %p239 = por %p237, %p238
    %p240 = scmp.ne.s32.totalorder %s229, %s232
    %p241 = scmp.eq.s32.totalorder %s20, 1
    %p242 = por %p240, %p241
    %p243 = scmp.ne.s32.totalorder %s232, %s233
    %p244 = scmp.eq.s32.totalorder %s20, 0
    %p245 = por %p243, %p244
    %p246 = scmp.ne.s32.totalorder %s232, %s233
    %p247 = scmp.eq.s32.totalorder %s21, 1
    %p248 = por %p246, %p247
    %p250 = scmp.ne.s32.totalorder %s233, %s249
    %p251 = scmp.eq.s32.totalorder %s21, 0
    %p252 = por %p250, %p251
    %p253 = scmp.le.s32.totalorder 1, %s15
    %p254 = scmp.lt.s32.totalorder %s15, 3
    %p255 = pnand %p253, %p254
    %p256 = pneg %p255
    // Predicated region
    $region9: #{event_gcn_forward.1} parent=5 // pred_check
      _
    $region10: #{event_gcn_forward.1} parent=5 // pred_check_branch
      %258 = sbr.rel (%p255) target = $region12
    $region11: #{event_gcn_forward.1} parent=5 // pred_region
      %s259 = ssub.s32 %s15, 1
      // Predicated region
      $region13: #{event_gcn_forward.1} parent=11 // pred_check
        %p260 = pneg %p114
      $region14: #{event_gcn_forward.1} parent=11 // pred_check_branch
        %262 = sbr.rel (%p260) target = $region16
      $region15: #{event_gcn_forward.1} parent=11 // pred_region
        _
      $region16: #{event_gcn_forward.1} parent=11 // pred_fallthru
        _
      // Predicated region
      $region17: #{event_gcn_forward.1} parent=11 // pred_check
        %p263 = pneg %p135
      $region18: #{event_gcn_forward.1} parent=11 // pred_check_branch
        %265 = sbr.rel (%p263) target = $region20
      $region19: #{event_gcn_forward.1} parent=11 // pred_region
        _
      $region20: #{event_gcn_forward.1} parent=11 // pred_fallthru
        _
      // Predicated region
      $region21: #{event_gcn_forward.1} parent=11 // pred_check
        %p266 = pneg %p156
      $region22: #{event_gcn_forward.1} parent=11 // pred_check_branch
        %268 = sbr.rel (%p266) target = $region24
      $region23: #{event_gcn_forward.1} parent=11 // pred_region
        _
      $region24: #{event_gcn_forward.1} parent=11 // pred_fallthru
        _
      // Predicated region
      $region25: #{event_gcn_forward.1} parent=11 // pred_check
        %p269 = pneg %p177
      $region26: #{event_gcn_forward.1} parent=11 // pred_check_branch
        %271 = sbr.rel (%p269) target = $region28
      $region27: #{event_gcn_forward.1} parent=11 // pred_region
        _
      $region28: #{event_gcn_forward.1} parent=11 // pred_fallthru
        _
      // Predicated region
      $region29: #{event_gcn_forward.1} parent=11 // pred_check
        %p272 = pneg %p198
      $region30: #{event_gcn_forward.1} parent=11 // pred_check_branch
        %274 = sbr.rel (%p272) target = $region32
      $region31: #{event_gcn_forward.1} parent=11 // pred_region
        _
      $region32: #{event_gcn_forward.1} parent=11 // pred_fallthru
        _
      // Predicated region
      $region33: #{event_gcn_forward.1} parent=11 // pred_check
        %p275 = pneg %p219
      $region34: #{event_gcn_forward.1} parent=11 // pred_check_branch
        %277 = sbr.rel (%p275) target = $region36
      $region35: #{event_gcn_forward.1} parent=11 // pred_region
        _
      $region36: #{event_gcn_forward.1} parent=11 // pred_fallthru
        _
    $region12: #{event_gcn_forward.1} parent=5 // pred_fallthru
      _
    %p278 = scmp.lt.s32.totalorder %s15, 2
    // Predicated region
    $region37: #{event_gcn_forward.1} parent=5 // pred_check
      %p279 = pneg %p278
    $region38: #{event_gcn_forward.1} parent=5 // pred_check_branch
      %281 = sbr.rel (%p279) target = $region40
    $region39: #{event_gcn_forward.1} parent=5 // pred_region
      // Predicated region
      $region41: #{event_gcn_forward.1} parent=39 // pred_check
        %p282 = pneg %p35
      $region42: #{event_gcn_forward.1} parent=39 // pred_check_branch
        %284 = sbr.rel (%p282) target = $region44
      $region43: #{event_gcn_forward.1} parent=39 // pred_region
        %s285 = smul.u32 4, %s15
        %p286 = scmp.lt.s32.totalorder %s285, 7
        %s287 = scalar_select %p286, %s285, 7
        %s288 = smul.addr %s287, 8
        %s289 = scalar_lea.vmem %s0, %s288
        %s290 = smul.u32 4, %s15
      $region44: #{event_gcn_forward.1} parent=39 // pred_fallthru
        _
      // Predicated region
      $region45: #{event_gcn_forward.1} parent=39 // pred_check
        %p291 = pneg %p61
      $region46: #{event_gcn_forward.1} parent=39 // pred_check_branch
        %293 = sbr.rel (%p291) target = $region48
      $region47: #{event_gcn_forward.1} parent=39 // pred_region
        %s294 = smul.u32 4, %s15
        %p295 = scmp.lt.s32.totalorder %s294, 7
        %s296 = scalar_select %p295, %s294, 7
        %s297 = smul.addr %s296, 8
        %s298 = scalar_lea.vmem %s1, %s297
        %s299 = smul.u32 4, %s15
      $region48: #{event_gcn_forward.1} parent=39 // pred_fallthru
        _
      // Predicated region
      $region49: #{event_gcn_forward.1} parent=39 // pred_check
        %p300 = pneg %p87
      $region50: #{event_gcn_forward.1} parent=39 // pred_check_branch
        %302 = sbr.rel (%p300) target = $region52
      $region51: #{event_gcn_forward.1} parent=39 // pred_region
        %s303 = smul.u32 4, %s15
        %p304 = scmp.lt.s32.totalorder %s303, 7
        %s305 = scalar_select %p304, %s303, 7
        %s306 = smul.addr %s305, 8
        %s307 = scalar_lea.vmem %s2, %s306
        %s308 = smul.u32 4, %s15
      $region52: #{event_gcn_forward.1} parent=39 // pred_fallthru
        _
    $region40: #{event_gcn_forward.1} parent=5 // pred_fallthru
      _
    %p309 = scmp.le.s32.totalorder 1, %s15
    %p310 = scmp.lt.s32.totalorder %s15, 3
    %p311 = pnand %p309, %p310
    %p312 = pneg %p311
    // Predicated region
    $region53: #{event_gcn_forward.1} parent=5 // pred_check
      _
    $region54: #{event_gcn_forward.1} parent=5 // pred_check_branch
      %314 = sbr.rel (%p311) target = $region56
    $region55: #{event_gcn_forward.1} parent=5 // pred_region
      %s315 = ssub.s32 %s15, 1
      %s316 = smul.u32 4, %s20
      %p317 = scmp.lt.s32.totalorder %s316, 7
      %s318 = scalar_select %p317, %s316, 7
      %s319 = smul.addr %s318, 8
      %s320 = scalar_lea.vmem %s0, %s319
      %p321 = pneg %p41
      %p322 = pneg %p38
      %s323 = smul.u32 4, %s20
      %p324 = scmp.lt.s32.totalorder %s323, 7
      %s325 = scalar_select %p324, %s323, 7
      %s326 = smul.addr %s325, 8
      %s327 = scalar_lea.vmem %s1, %s326
      %p328 = pneg %p67
      %p329 = pneg %p64
      %s330 = smul.u32 4, %s20
      %p331 = scmp.lt.s32.totalorder %s330, 7
      %s332 = scalar_select %p331, %s330, 7
      %s333 = smul.addr %s332, 8
      %s334 = scalar_lea.vmem %s2, %s333
      %p335 = pneg %p93
      %p336 = pneg %p90
      %p337 = pneg %p114
      %p338 = pneg %p111
      %p339 = pneg %p135
      %p340 = pneg %p132
      %p341 = pneg %p156
      %p342 = pneg %p153
      %p343 = pneg %p177
      %p344 = pneg %p174
      %p345 = pneg %p198
      %p346 = pneg %p195
      %p347 = pneg %p219
      %p348 = pneg %p216
      %p349 = pneg %p245
      %p350 = pneg %p242
      %s351 = smul.u32 4, %s20
      %p352 = scmp.lt.s32.totalorder %s351, 7
      %s353 = scalar_select %p352, %s351, 7
      %s354 = smul.addr %s353, 4
      %s355 = scalar_lea.vmem %s9, %s354
      %s356 = smul.u32 4, %s20
      %p357 = scmp.lt.s32.totalorder %s356, 7
      %s358 = scalar_select %p357, %s356, 7
      %s359 = smul.addr %s358, 8
      %s360 = scalar_lea.vmem %s0, %s359
      %s361 = smul.u32 4, %s20
      %s362 = smul.u32 4, %s20
      %p363 = scmp.lt.s32.totalorder %s362, 7
      %s364 = scalar_select %p363, %s362, 7
      %s365 = smul.addr %s364, 8
      %s366 = scalar_lea.vmem %s1, %s365
      %s367 = smul.u32 4, %s20
      %s368 = smul.u32 4, %s20
      %p369 = scmp.lt.s32.totalorder %s368, 7
      %s370 = scalar_select %p369, %s368, 7
      %s371 = smul.addr %s370, 8
      %s372 = scalar_lea.vmem %s2, %s371
      %s373 = smul.u32 4, %s20
      %s374 = smul.u32 4, %s20
      %p375 = scmp.lt.s32.totalorder %s374, 7
      %s376 = scalar_select %p375, %s374, 7
      %s377 = smul.addr %s376, 4
      %s378 = scalar_lea.vmem %s9, %s377
      %s379 = smul.u32 4, %s20
      %v381 = vld [vmem:[%s360] sm:$0xff]
      %v382 = vld [vmem:[%s360 + $0x8] sm:$0xff]
      %v383 = vld [vmem:[%s360 + $0x10] sm:$0xff]
      %v384 = vld [vmem:[%s360 + $0x18] sm:$0xff]
      %v385 = vpack.c.bf16 %v382, %v381
      %v386 = vpack.c.bf16 %v384, %v383
      %v387 = vld [vmem:[%s3] sm:$0xf]
      %v388 = vld [vmem:[%s3 + $0x4] sm:$0xf]
      %v389 = vld [vmem:[%s3 + $0x8] sm:$0xf]
      %v390 = vld [vmem:[%s3 + $0xc] sm:$0xf]
      %v391 = vld [vmem:[%s3 + $0x10] sm:$0xf]
      %v392 = vld [vmem:[%s3 + $0x14] sm:$0xf]
      %v393 = vld [vmem:[%s3 + $0x18] sm:$0xf]
      %v394 = vld [vmem:[%s3 + $0x1c] sm:$0xf]
      %v395 = vld [vmem:[%s4] sm:$0x1]
      %v397 = vlaneseq
      %v398 = vshrl.u32 %v397, 7
      %v399 = vsub.s32 0, %v398
      %v400 = vrot.slane %v395, %v399
      %v410 = vunpack.c.l.b16 %v387
      %v411 = vunpack.c.l.b16 %v388
      %v412 = vunpack.c.l.b16 %v389
      %v413 = vunpack.c.l.b16 %v390
      %v414 = vunpack.c.l.b16 %v391
      %v415 = vunpack.c.l.b16 %v392
      %v416 = vunpack.c.l.b16 %v393
      %v417 = vunpack.c.l.b16 %v394
      %v418 = vpack.c.b16 %v411, %v410
      %v419 = vpack.c.b16 %v413, %v412
      %v420 = vpack.c.b16 %v415, %v414
      %v421 = vpack.c.b16 %v417, %v416
      %vm426 = vcmask 523264
      %v428 = vsel %vm426, %v385, 0
      %v431 = vsel %vm426, %v386, 0
      %433 = vmatprep.subr.bf16.mxu0 0
      %434 = vmatpush1.bf16.msra.mxu0 0
      %435 = vmatprep.subr.bf16.mxu0 0
      %436 = vmatpush1.bf16.msra.mxu0 0
      %437 = vmatprep.subr.bf16.mxu0 0
      %438 = vmatpush1.bf16.msra.mxu0 0
      %439 = vmatprep.subr.bf16.mxu0 0
      %440 = vmatpush1.bf16.msra.mxu0 0
      %441 = vmatprep.subr.bf16.mxu0 0
      %442 = vmatpush1.bf16.msra.mxu0 %v421
      %443 = vmatprep.subr.bf16.mxu0 0
      %444 = vmatpush1.bf16.msra.mxu0 %v420
      %445 = vmatprep.subr.bf16.mxu0 0
      %446 = vmatpush1.bf16.msra.mxu0 %v419
      %447 = vmatprep.subr.bf16.mxu0 0
      %448 = vmatpush1.bf16.msra.mxu0 %v418
      %449 = vmatprep.subr.bf16.mxu0 0
      %450 = vmatpush2.bf16.msra.mxu0 0
      %451 = vmatprep.subr.bf16.mxu0 0
      %452 = vmatpush2.bf16.msra.mxu0 0
      %453 = vmatprep.subr.bf16.mxu0 0
      %454 = vmatpush2.bf16.msra.mxu0 0
      %455 = vmatprep.subr.bf16.mxu0 0
      %456 = vmatpush2.bf16.msra.mxu0 0
      %457 = vmatprep.subr.bf16.mxu0 0
      %458 = vmatpush2.bf16.msra.mxu0 0
      %459 = vmatprep.subr.bf16.mxu0 0
      %460 = vmatpush2.bf16.msra.mxu0 0
      %461 = vmatprep.subr.bf16.mxu0 0
      %462 = vmatpush2.bf16.msra.mxu0 0
      %463 = vmatprep.subr.bf16.mxu0 0
      %464 = vmatpush2.bf16.msra.mxu0 0
      %465 = vmatprep.mubr.bf16.mxu0 0
      %466 = vmatmul.mubr.bf16.gmra.mxu0 %v428
      %v467 = vpop.f32.mrf.mxu0
      %v468 = vadd.f32 %v400, %v467
      %v469 = vpop.f32.mrf.mxu0
      %v470 = vpop.f32.mrf.mxu0
      %v471 = vadd.f32 %v400, %v470
      %v472 = vpop.f32.mrf.mxu0
      %473 = vmatprep.mubr.bf16.mxu0 0
      %474 = vmatmul.mubr.bf16.gmra.mxu0 %v431
      %v475 = vpop.f32.mrf.mxu0
      %v476 = vadd.f32 %v400, %v475
      %v477 = vpop.f32.mrf.mxu0
      %v478 = vpop.f32.mrf.mxu0
      %v479 = vadd.f32 %v400, %v478
      %v480 = vpop.f32.mrf.mxu0
      %481 = vdwg.mxu0
      %v482 = vld [vmem:[%s372] sm:$0xff]
      %v483 = vld [vmem:[%s372 + $0x8] sm:$0xff]
      %v484 = vld [vmem:[%s372 + $0x10] sm:$0xff]
      %v485 = vld [vmem:[%s372 + $0x18] sm:$0xff]
      %v486 = vadd.f32 %v482, %v468
      %v487 = vadd.f32 %v483, %v471
      %v488 = vadd.f32 %v484, %v476
      %v489 = vadd.f32 %v485, %v479
      %v490 = vmax.f32 %v486, 0.0
      %v491 = vmax.f32 %v487, 0.0
      %v492 = vmax.f32 %v488, 0.0
      %v493 = vmax.f32 %v489, 0.0
      %v494 = vld [vmem:[%s366] sm:$0xff]
      %v495 = vld [vmem:[%s366 + $0x8] sm:$0xff]
      %v496 = vld [vmem:[%s366 + $0x10] sm:$0xff]
      %v497 = vld [vmem:[%s366 + $0x18] sm:$0xff]
      %v498 = vadd.f32 %v494, %v490
      %v499 = vadd.f32 %v495, %v491
      %v500 = vadd.f32 %v496, %v492
      %v501 = vadd.f32 %v497, %v493
      %v502 = vpack.c.bf16 %v499, %v498
      %v503 = vpack.c.bf16 %v501, %v500
      %v504 = vld [vmem:[%s5] sm:$0xf]
      %v505 = vld [vmem:[%s5 + $0x4] sm:$0xf]
      %v506 = vld [vmem:[%s5 + $0x8] sm:$0xf]
      %v507 = vld [vmem:[%s5 + $0xc] sm:$0xf]
      %v508 = vld [vmem:[%s5 + $0x10] sm:$0xf]
      %v509 = vld [vmem:[%s5 + $0x14] sm:$0xf]
      %v510 = vld [vmem:[%s5 + $0x18] sm:$0xf]
      %v511 = vld [vmem:[%s5 + $0x1c] sm:$0xf]
      %v512 = vld [vmem:[%s5 + $0x20] sm:$0xf]
      %v513 = vld [vmem:[%s5 + $0x24] sm:$0xf]
      %v514 = vld [vmem:[%s5 + $0x28] sm:$0xf]
      %v515 = vld [vmem:[%s5 + $0x2c] sm:$0xf]
      %v516 = vld [vmem:[%s5 + $0x30] sm:$0xf]
      %v517 = vld [vmem:[%s5 + $0x34] sm:$0xf]
      %v518 = vld [vmem:[%s5 + $0x38] sm:$0xf]
      %v519 = vld [vmem:[%s5 + $0x3c] sm:$0xf]
      %v520 = vld [vmem:[%s6] sm:$0x1]
      %v522 = vlaneseq
      %v523 = vshrl.u32 %v522, 7
      %v524 = vsub.s32 0, %v523
      %v525 = vrot.slane %v520, %v524
      %v543 = vunpack.c.l.b16 %v504
      %v544 = vunpack.c.l.b16 %v505
      %v545 = vunpack.c.l.b16 %v506
      %v546 = vunpack.c.l.b16 %v507
      %v547 = vunpack.c.l.b16 %v508
      %v548 = vunpack.c.l.b16 %v509
      %v549 = vunpack.c.l.b16 %v510
      %v550 = vunpack.c.l.b16 %v511
      %v551 = vunpack.c.l.b16 %v512
      %v552 = vunpack.c.l.b16 %v513
      %v553 = vunpack.c.l.b16 %v514
      %v554 = vunpack.c.l.b16 %v515
      %v555 = vunpack.c.l.b16 %v516
      %v556 = vunpack.c.l.b16 %v517
      %v557 = vunpack.c.l.b16 %v518
      %v558 = vunpack.c.l.b16 %v519
      %v559 = vpack.c.b16 %v544, %v543
      %v560 = vpack.c.b16 %v546, %v545
      %v561 = vpack.c.b16 %v548, %v547
      %v562 = vpack.c.b16 %v550, %v549
      %v563 = vpack.c.b16 %v552, %v551
      %v564 = vpack.c.b16 %v554, %v553
      %v565 = vpack.c.b16 %v556, %v555
      %v566 = vpack.c.b16 %v558, %v557
      %575 = vmatprep.subr.bf16.mxu0 0
      %576 = vmatpush1.bf16.msra.mxu0 %v566
      %577 = vmatprep.subr.bf16.mxu0 0
      %578 = vmatpush1.bf16.msra.mxu0 %v565
      %579 = vmatprep.subr.bf16.mxu0 0
      %580 = vmatpush1.bf16.msra.mxu0 %v564
      %581 = vmatprep.subr.bf16.mxu0 0
      %582 = vmatpush1.bf16.msra.mxu0 %v563
      %583 = vmatprep.subr.bf16.mxu0 0
      %584 = vmatpush1.bf16.msra.mxu0 %v562
      %585 = vmatprep.subr.bf16.mxu0 0
      %586 = vmatpush1.bf16.msra.mxu0 %v561
      %587 = vmatprep.subr.bf16.mxu0 0
      %588 = vmatpush1.bf16.msra.mxu0 %v560
      %589 = vmatprep.subr.bf16.mxu0 0
      %590 = vmatpush1.bf16.msra.mxu0 %v559
      %591 = vmatprep.subr.bf16.mxu0 0
      %592 = vmatpush2.bf16.msra.mxu0 0
      %593 = vmatprep.subr.bf16.mxu0 0
      %594 = vmatpush2.bf16.msra.mxu0 0
      %595 = vmatprep.subr.bf16.mxu0 0
      %596 = vmatpush2.bf16.msra.mxu0 0
      %597 = vmatprep.subr.bf16.mxu0 0
      %598 = vmatpush2.bf16.msra.mxu0 0
      %599 = vmatprep.subr.bf16.mxu0 0
      %600 = vmatpush2.bf16.msra.mxu0 0
      %601 = vmatprep.subr.bf16.mxu0 0
      %602 = vmatpush2.bf16.msra.mxu0 0
      %603 = vmatprep.subr.bf16.mxu0 0
      %604 = vmatpush2.bf16.msra.mxu0 0
      %605 = vmatprep.subr.bf16.mxu0 0
      %606 = vmatpush2.bf16.msra.mxu0 0
      %607 = vmatprep.mubr.bf16.mxu0 0
      %608 = vmatmul.mubr.bf16.gmra.mxu0 %v502
      %v609 = vpop.f32.mrf.mxu0
      %v610 = vadd.f32 %v525, %v609
      %v611 = vpop.f32.mrf.mxu0
      %v612 = vpop.f32.mrf.mxu0
      %v613 = vadd.f32 %v525, %v612
      %v614 = vpop.f32.mrf.mxu0
      %615 = vmatprep.mubr.bf16.mxu0 0
      %616 = vmatmul.mubr.bf16.gmra.mxu0 %v503
      %v617 = vpop.f32.mrf.mxu0
      %v618 = vadd.f32 %v525, %v617
      %v619 = vpop.f32.mrf.mxu0
      %v620 = vpop.f32.mrf.mxu0
      %v621 = vadd.f32 %v525, %v620
      %v622 = vpop.f32.mrf.mxu0
      %623 = vdwg.mxu0
      %v624 = vmax.f32 %v610, 0.0
      %v625 = vmax.f32 %v613, 0.0
      %v626 = vmax.f32 %v618, 0.0
      %v627 = vmax.f32 %v621, 0.0
      %v628 = vpack.c.bf16 %v625, %v624
      %v629 = vpack.c.bf16 %v627, %v626
      %v630 = vld [vmem:[%s7] sm:$0xf]
      %v631 = vld [vmem:[%s7 + $0x4] sm:$0xf]
      %v632 = vld [vmem:[%s7 + $0x8] sm:$0xf]
      %v633 = vld [vmem:[%s7 + $0xc] sm:$0xf]
      %v634 = vld [vmem:[%s7 + $0x10] sm:$0xf]
      %v635 = vld [vmem:[%s7 + $0x14] sm:$0xf]
      %v636 = vld [vmem:[%s7 + $0x18] sm:$0xf]
      %v637 = vld [vmem:[%s7 + $0x1c] sm:$0xf]
      %v638 = vld [vmem:[%s7 + $0x20] sm:$0xf]
      %v639 = vld [vmem:[%s7 + $0x24] sm:$0xf]
      %v640 = vld [vmem:[%s7 + $0x28] sm:$0xf]
      %v641 = vld [vmem:[%s7 + $0x2c] sm:$0xf]
      %v642 = vld [vmem:[%s7 + $0x30] sm:$0xf]
      %v643 = vld [vmem:[%s7 + $0x34] sm:$0xf]
      %v644 = vld [vmem:[%s7 + $0x38] sm:$0xf]
      %v645 = vld [vmem:[%s7 + $0x3c] sm:$0xf]
      %v646 = vld [vmem:[%s8] sm:$0x1]
      %v648 = vlaneseq
      %v649 = vshrl.u32 %v648, 7
      %v650 = vsub.s32 0, %v649
      %v651 = vrot.slane %v646, %v650
      %v669 = vunpack.c.l.b16 %v630
      %v670 = vunpack.c.l.b16 %v631
      %v671 = vunpack.c.l.b16 %v632
      %v672 = vunpack.c.l.b16 %v633
      %v673 = vunpack.c.l.b16 %v634
      %v674 = vunpack.c.l.b16 %v635
      %v675 = vunpack.c.l.b16 %v636
      %v676 = vunpack.c.l.b16 %v637
      %v677 = vunpack.c.l.b16 %v638
      %v678 = vunpack.c.l.b16 %v639
      %v679 = vunpack.c.l.b16 %v640
      %v680 = vunpack.c.l.b16 %v641
      %v681 = vunpack.c.l.b16 %v642
      %v682 = vunpack.c.l.b16 %v643
      %v683 = vunpack.c.l.b16 %v644
      %v684 = vunpack.c.l.b16 %v645
      %v685 = vpack.c.b16 %v670, %v669
      %v686 = vpack.c.b16 %v672, %v671
      %v687 = vpack.c.b16 %v674, %v673
      %v688 = vpack.c.b16 %v676, %v675
      %v689 = vpack.c.b16 %v678, %v677
      %v690 = vpack.c.b16 %v680, %v679
      %v691 = vpack.c.b16 %v682, %v681
      %v692 = vpack.c.b16 %v684, %v683
      %701 = vmatprep.subr.bf16.mxu0 0
      %702 = vmatpush1.bf16.msra.mxu0 %v692
      %703 = vmatprep.subr.bf16.mxu0 0
      %704 = vmatpush1.bf16.msra.mxu0 %v691
      %705 = vmatprep.subr.bf16.mxu0 0
      %706 = vmatpush1.bf16.msra.mxu0 %v690
      %707 = vmatprep.subr.bf16.mxu0 0
      %708 = vmatpush1.bf16.msra.mxu0 %v689
      %709 = vmatprep.subr.bf16.mxu0 0
      %710 = vmatpush1.bf16.msra.mxu0 %v688
      %711 = vmatprep.subr.bf16.mxu0 0
      %712 = vmatpush1.bf16.msra.mxu0 %v687
      %713 = vmatprep.subr.bf16.mxu0 0
      %714 = vmatpush1.bf16.msra.mxu0 %v686
      %715 = vmatprep.subr.bf16.mxu0 0
      %716 = vmatpush1.bf16.msra.mxu0 %v685
      %717 = vmatprep.subr.bf16.mxu0 0
      %718 = vmatpush2.bf16.msra.mxu0 0
      %719 = vmatprep.subr.bf16.mxu0 0
      %720 = vmatpush2.bf16.msra.mxu0 0
      %721 = vmatprep.subr.bf16.mxu0 0
      %722 = vmatpush2.bf16.msra.mxu0 0
      %723 = vmatprep.subr.bf16.mxu0 0
      %724 = vmatpush2.bf16.msra.mxu0 0
      %725 = vmatprep.subr.bf16.mxu0 0
      %726 = vmatpush2.bf16.msra.mxu0 0
      %727 = vmatprep.subr.bf16.mxu0 0
      %728 = vmatpush2.bf16.msra.mxu0 0
      %729 = vmatprep.subr.bf16.mxu0 0
      %730 = vmatpush2.bf16.msra.mxu0 0
      %731 = vmatprep.subr.bf16.mxu0 0
      %732 = vmatpush2.bf16.msra.mxu0 0
      %733 = vmatprep.mubr.bf16.mxu0 0
      %734 = vmatmul.mubr.bf16.gmra.mxu0 %v628
      %v735 = vpop.f32.mrf.mxu0
      %v736 = vadd.f32 %v651, %v735
      %v737 = vpop.f32.mrf.mxu0
      %v738 = vpop.f32.mrf.mxu0
      %v739 = vadd.f32 %v651, %v738
      %v740 = vpop.f32.mrf.mxu0
      %741 = vmatprep.mubr.bf16.mxu0 0
      %742 = vmatmul.mubr.bf16.gmra.mxu0 %v629
      %v743 = vpop.f32.mrf.mxu0
      %v744 = vadd.f32 %v651, %v743
      %v745 = vpop.f32.mrf.mxu0
      %v746 = vpop.f32.mrf.mxu0
      %v747 = vadd.f32 %v651, %v746
      %v748 = vpop.f32.mrf.mxu0
      %749 = vdwg.mxu0
      %v750 = vpack.c.bf16 %v739, %v736
      %v751 = vpack.c.bf16 %v747, %v744
      %v754 = vunpack.c.l.b16 %v750
      %v755 = vunpack.c.h.b16 %v750
      %v756 = vunpack.c.l.b16 %v751
      %v757 = vunpack.c.h.b16 %v751
      %v758 = vpack.c.b16 %v754, %v754
      %v759 = vpack.c.b16 %v755, %v755
      %v760 = vpack.c.b16 %v756, %v756
      %v761 = vpack.c.b16 %v757, %v757
      %766 = vst [vmem:[%s378] sm:$0xf] %v758
      %767 = vst [vmem:[%s378 + $0x4] sm:$0xf] %v759
      %768 = vst [vmem:[%s378 + $0x8] sm:$0xf] %v760
      %769 = vst [vmem:[%s378 + $0xc] sm:$0xf] %v761
      %s770 = smul.u32 4, %s20
      %p771 = scmp.lt.s32.totalorder %s770, 7
      %s772 = scalar_select %p771, %s770, 7
      %s773 = smul.addr %s772, 4
      %s774 = scalar_lea.vmem %s9, %s773
      // Predicated region
      $region57: #{event_gcn_forward.1} parent=55 // pred_check
        %p775 = pneg %p242
      $region58: #{event_gcn_forward.1} parent=55 // pred_check_branch
        %777 = sbr.rel (%p775) target = $region60
      $region59: #{event_gcn_forward.1} parent=55 // pred_region
        %s778 = smul.u32 4, %s20
      $region60: #{event_gcn_forward.1} parent=55 // pred_fallthru
        _
    $region56: #{event_gcn_forward.1} parent=5 // pred_fallthru
      _
    %p779 = scmp.le.s32.totalorder 2, %s15
    // Predicated region
    $region61: #{event_gcn_forward.1} parent=5 // pred_check
      %p780 = pneg %p779
    $region62: #{event_gcn_forward.1} parent=5 // pred_check_branch
      %782 = sbr.rel (%p780) target = $region64
    $region63: #{event_gcn_forward.1} parent=5 // pred_region
      %s783 = ssub.s32 %s15, 2
      // Predicated region
      $region65: #{event_gcn_forward.1} parent=63 // pred_check
        %p784 = pneg %p248
      $region66: #{event_gcn_forward.1} parent=63 // pred_check_branch
        %786 = sbr.rel (%p784) target = $region68
      $region67: #{event_gcn_forward.1} parent=63 // pred_region
        %s787 = smul.u32 4, %s21
        %p788 = scmp.lt.s32.totalorder %s787, 7
        %s789 = scalar_select %p788, %s787, 7
        %s790 = smul.addr %s789, 4
        %s791 = scalar_lea.vmem %s9, %s790
      $region68: #{event_gcn_forward.1} parent=63 // pred_fallthru
        _
    $region64: #{event_gcn_forward.1} parent=5 // pred_fallthru
      _
  $region6: #{event_gcn_forward.1} parent=0 // loop_footer
    %s19 = sadd.s32 1, %s15
  $region7: #{event_gcn_forward.1} parent=0 // loop_footer_branch
    %14 = sbr.rel target = $region3
  $region8: #{event_gcn_forward.1} parent=0 // loop_exit
    _

</llo_original>
